<compile_context>
chip_gen: v7x
topology: tpu7x:2x2x1
jax: 0.10.0
libtpu: 0.0.40
codegen_flags: <defaults>
</compile_context>

<pallas_src>
from functools import partial

import jax
import jax.numpy as jnp
from jax import lax
from jax.experimental import pallas as pl
from jax.experimental.pallas import tpu as pltpu

# mirrors CONFIG['SetAbstraction']['max_num_neighbors'] and module hyperparams
MAX_NUM_NEIGHBORS = 16      # K
RATIO = 0.5
RADIUS = 0.4
COUT_PAD = 128              # pad MLP output columns to a full 128-lane width
NEIGHBOR_GROUP = 4          # neighbor slots per layer-2 matmul (contraction = 4*H = 128)


def _round_up(n, m):
    return (n + m - 1) // m * m


# ----------------------------- Pallas kernel -------------------------------
def pointnet_conv_kernel(feat_ref, w1bd_ref, w2bd_ref, b2p_ref, out_ref):
    # feat_ref : (tm, K*CH)       bf16  packed [x_j, pos_j-pos_i, 1.0] per neighbor slot
    # w1bd_ref : (K*CH, K*H)      bf16  kron(I_K, [w1; b1])  (bias rides the ones channel)
    # w2bd_ref : (G*H, G*COUT_PAD) bf16 kron(I_G, w2 zero-padded to 128 cols)
    # b2p_ref  : (1, COUT_PAD)    f32
    # out_ref  : (tm, COUT_PAD)   f32
    G = NEIGHBOR_GROUP
    H = w2bd_ref.shape[0] // G
    C = out_ref.shape[1]
    K = w1bd_ref.shape[1] // H

    # Layer 1 for all K neighbor slots in one MXU pass (f32 accumulate); the
    # layer-1 bias is folded into the constant-1 channel, so no bias add here.
    h = jnp.dot(feat_ref[...], w1bd_ref[...], preferred_element_type=jnp.float32)
    h = jnp.maximum(h, 0.0).astype(jnp.bfloat16)                       # (tm, K*H)

    w2bd = w2bd_ref[...]

    # Layer 2 in groups of G neighbor slots (contraction = G*H = 128 lanes), then
    # max over the G lane-blocks.  Invalid slots were re-pointed at the self
    # neighbor in the wrapper, so the plain max over all K slots is already the
    # masked max.  ReLU and the b2 add are hoisted past the max (both monotone).
    acc = None
    for g0 in range(0, K, G):                                          # K/G = 4, unrolled
        z = jnp.dot(h[:, g0 * H:(g0 + G) * H], w2bd,
                    preferred_element_type=jnp.float32)                # (tm, G*C)
        for j in range(G):
            zj = z[:, j * C:(j + 1) * C]                               # (tm, C) lane-aligned
            acc = zj if acc is None else jnp.maximum(acc, zj)
    out_ref[...] = jnp.maximum(acc + b2p_ref[...], 0.0).astype(out_ref.dtype)


def pointnet_conv_pallas(feat_packed, w1bd, w2bd, b2p, tm):
    Mp, L = feat_packed.shape
    KH = w1bd.shape[1]
    GH, GC = w2bd.shape
    assert Mp % tm == 0
    grid = (Mp // tm,)
    return pl.pallas_call(
        pointnet_conv_kernel,
        out_shape=jax.ShapeDtypeStruct((Mp, COUT_PAD), jnp.float32),
        grid=grid,
        in_specs=[
            pl.BlockSpec((tm, L), lambda i: (i, 0)),       # packed edge features
            pl.BlockSpec((L, KH), lambda i: (0, 0)),       # block-diag W1 (resident)
            pl.BlockSpec((GH, GC), lambda i: (0, 0)),      # block-diag W2 (resident)
            pl.BlockSpec((1, COUT_PAD), lambda i: (0, 0)),  # padded b2
        ],
        out_specs=pl.BlockSpec((tm, COUT_PAD), lambda i: (i, 0)),
        compiler_params=pltpu.CompilerParams(
            dimension_semantics=("parallel",),
            vmem_limit_bytes=32 * 1024 * 1024,
        ),
    )(feat_packed, w1bd, w2bd, b2p)


# ------------------------------ JAX glue ------------------------------------
def fps_one_graph(pos_g, m):
    # Farthest point sampling, deterministic start at local index 0.
    # TODO(synk): torch_cluster fps uses a random start point by default.
    n = pos_g.shape[0]

    def body(i, carry):
        sel, dist = carry
        last = pos_g[sel[i - 1]]
        d = jnp.sum((pos_g - last[None, :]) ** 2, axis=-1)
        dist = jnp.minimum(dist, d)
        nxt = jnp.argmax(dist).astype(jnp.int32)
        sel = sel.at[i].set(nxt)
        return sel, dist

    sel0 = jnp.zeros((m,), jnp.int32)
    dist0 = jnp.full((n,), jnp.inf, jnp.float32)
    sel, _ = lax.fori_loop(1, m, body, (sel0, dist0))
    return sel


def radius_group(pos, batch, idx, r, k):
    # For each center: up to k points within radius r and in the same graph.
    # TODO(synk): torch_cluster radius keeps the *first* k neighbors found, not
    # the nearest k; identical whenever the true neighbor count is <= k.
    ctr = pos[idx]                       # (M,3)
    bctr = batch[idx]                    # (M,)
    d2 = jnp.sum((ctr[:, None, :] - pos[None, :, :]) ** 2, axis=-1)   # (M,N)
    same = bctr[:, None] == batch[None, :]
    d2 = jnp.where(same, d2, jnp.inf)
    d2 = jnp.where(d2 <= r * r, d2, jnp.inf)
    neg_top, nbr_idx = lax.top_k(-d2, k)                              # (M,k)
    mask = jnp.isfinite(neg_top).astype(jnp.float32)
    nbr_idx = jnp.where(mask > 0, nbr_idx, 0)
    return nbr_idx.astype(jnp.int32), mask


@partial(jax.jit, static_argnames=("tm",))
def sa_module_forward(x, pos, batch, idx, nbr_idx, mask, w1, b1, w2, b2, tm=512):
    """PointNetConv hot path on the Pallas kernel; returns (x_out, pos[idx], batch[idx])."""
    M, K = nbr_idx.shape
    cin = x.shape[1]
    H = w1.shape[1]
    cout = w2.shape[1]
    CH = cin + 3 + 1                       # [x, rel, 1.0]; cin=4 -> K*CH = 128 lanes exactly
    assert K % NEIGHBOR_GROUP == 0

    # Invalid neighbor slots are re-pointed at the center itself; the center is
    # always its own valid neighbor (dist 0 <= r, same graph), so duplicating it
    # leaves the neighbor max unchanged and no mask is needed inside the kernel.
    nbr_fill = jnp.where(mask > 0, nbr_idx, idx[:, None])

    # --- gather + pack per-edge features into one lane-dense bf16 slab -------
    x_nb = x[nbr_fill]                                            # (M,K,cin)
    rel = pos[nbr_fill] - pos[idx][:, None, :]                    # (M,K,3)   (== 0 on fills)
    ones = jnp.ones((M, K, 1), x.dtype)                           # bias carrier channel
    feat = jnp.concatenate([x_nb, rel, ones], axis=-1)            # (M,K,CH)

    tm_eff = min(tm, _round_up(M, 8))                             # keep tm a multiple of 8
    M_pad = _round_up(M, tm_eff)                                  # no dropped tail tiles
    feat2d = feat.reshape(M, K * CH)
    feat2d = jnp.pad(feat2d, ((0, M_pad - M), (0, 0))).astype(jnp.bfloat16)

    # --- weight prep ----------------------------------------------------------
    # Layer 1: bias folded as the last input row, block-diag over the K slots.
    w1p = jnp.concatenate([w1, b1.reshape(1, H)], axis=0)                      # (CH, H)
    w1bd = jnp.kron(jnp.eye(K, dtype=w1.dtype), w1p).astype(jnp.bfloat16)      # (K*CH, K*H)
    # Layer 2: output zero-padded to 128 lanes, block-diag over NEIGHBOR_GROUP slots.
    w2p = jnp.pad(w2, ((0, 0), (0, COUT_PAD - cout)))                          # (H, 128)
    w2bd = jnp.kron(jnp.eye(NEIGHBOR_GROUP, dtype=w2.dtype),
                    w2p).astype(jnp.bfloat16)                                  # (G*H, G*128)
    b2p = jnp.pad(b2.reshape(1, cout).astype(jnp.float32),
                  ((0, 0), (0, COUT_PAD - cout)))                              # (1, 128)

    x_out = pointnet_conv_pallas(feat2d, w1bd, w2bd, b2p, tm=tm_eff)[:M, :cout]
    return x_out, pos[idx], batch[idx]


# -------------------------------- driver -------------------------------------
if __name__ == "__main__":
    key = jax.random.PRNGKey(0)
    k_pos, k_x, k_w1, k_w2 = jax.random.split(key, 4)

    n_per_graph, num_graphs = 32, 2
    N = n_per_graph * num_graphs
    C_IN, HIDDEN, C_OUT = 4, 32, 32

    pos = jax.random.uniform(k_pos, (N, 3), jnp.float32)
    x = jax.random.normal(k_x, (N, C_IN), jnp.float32)
    batch = jnp.repeat(jnp.arange(num_graphs, dtype=jnp.int32), n_per_graph)

    # PointNetConv local nn = MLP([C_IN + 3, HIDDEN, C_OUT]) with ReLU,
    # PyTorch Linear default (uniform +-1/sqrt(fan_in)) init, deterministic keys.
    def linear_init(kw, fan_in, fan_out):
        bound = 1.0 / (fan_in ** 0.5)
        kw_w, kw_b = jax.random.split(kw)
        w = jax.random.uniform(kw_w, (fan_in, fan_out), jnp.float32, -bound, bound)
        b = jax.random.uniform(kw_b, (1, fan_out), jnp.float32, -bound, bound)
        return w, b

    w1, b1 = linear_init(k_w1, C_IN + 3, HIDDEN)
    w2, b2 = linear_init(k_w2, HIDDEN, C_OUT)

    # ---- SAModule.forward ----
    m_per_graph = int(RATIO * n_per_graph)
    sel = [fps_one_graph(pos[g * n_per_graph:(g + 1) * n_per_graph], m_per_graph)
           + g * n_per_graph for g in range(num_graphs)]
    idx = jnp.concatenate(sel)                                   # (M,)
    nbr_idx, mask = radius_group(pos, batch, idx, RADIUS, MAX_NUM_NEIGHBORS)

    x_out, new_pos, new_batch = sa_module_forward(
        x, pos, batch, idx, nbr_idx, mask, w1, b1, w2, b2, tm=512)
    x_out = jax.block_until_ready(x_out)

    # ---- pure-JAX reference of the conv hot path -----------------------------
    # Mirrors the kernel's bf16 input/weight rounding and folded layer-1 bias
    # (f32 accumulation) so the comparison isolates kernel plumbing; math is
    # otherwise identical to the module (masked max over valid neighbors).
    def bf16(v):
        return v.astype(jnp.bfloat16).astype(jnp.float32)

    x_nb = x[nbr_idx]
    rel = pos[nbr_idx] - pos[idx][:, None, :]
    ones = jnp.ones((idx.shape[0], MAX_NUM_NEIGHBORS, 1), jnp.float32)
    featr = bf16(jnp.concatenate([x_nb, rel, ones], axis=-1))    # (M,K,8)
    w1aug = bf16(jnp.concatenate([w1, b1.reshape(1, HIDDEN)], axis=0))
    h_ref = jnp.maximum(featr @ w1aug, 0.0)
    g_ref = jnp.maximum(bf16(h_ref) @ bf16(w2) + b2, 0.0)        # (M,K,C_OUT)
    # Masked max over valid neighbors; every center is its own neighbor, so the
    # max is always over a non-empty set.
    ref = jnp.max(jnp.where(mask[:, :, None] > 0, g_ref, -jnp.inf), axis=1)

    M = idx.shape[0]
    assert x_out.shape == (M, C_OUT)
    assert new_pos.shape == (M, 3)
    assert new_batch.shape == (M,)
    assert jnp.allclose(x_out, ref, atol=2e-4, rtol=2e-4), "Pallas/ref mismatch"
    print("KERNEL_OK")
</pallas_src>

<mosaic_0001>
module attributes {stable_mosaic.version = 11 : i64} {
  func.func @pointnet_conv_kernel(%arg0: i32, %arg1: memref<32x128xbf16, #tpu.memory_space<vmem>>, %arg2: memref<128x512xbf16, #tpu.memory_space<vmem>>, %arg3: memref<128x512xbf16, #tpu.memory_space<vmem>>, %arg4: memref<1x128xf32, #tpu.memory_space<vmem>>, %arg5: memref<32x128xf32, #tpu.memory_space<vmem>>) attributes {dimension_semantics = [#tpu.dimension_semantics<parallel>], iteration_bounds = array<i64: 1>, scalar_prefetch = 0 : i64, scratch_operands = 0 : i64, tpu.core_type = #tpu.core_type<tc>, window_params = [{transform_indices = @transform_0, window_bounds = array<i64: 32, 128>}, {pipeline_mode = #tpu.pipeline_mode<synchronous>, transform_indices = @transform_1, window_bounds = array<i64: 128, 512>}, {pipeline_mode = #tpu.pipeline_mode<synchronous>, transform_indices = @transform_2, window_bounds = array<i64: 128, 512>}, {pipeline_mode = #tpu.pipeline_mode<synchronous>, transform_indices = @transform_3, window_bounds = array<i64: 1, 128>}, {transform_indices = @transform_4, window_bounds = array<i64: 32, 128>}]} {
    %c0 = arith.constant 0 : index
    %c0_0 = arith.constant 0 : index
    %0 = vector.load %arg1[%c0, %c0_0] : memref<32x128xbf16, #tpu.memory_space<vmem>>, vector<32x128xbf16>
    %c0_1 = arith.constant 0 : index
    %c0_2 = arith.constant 0 : index
    %1 = vector.load %arg2[%c0_1, %c0_2] : memref<128x512xbf16, #tpu.memory_space<vmem>>, vector<128x512xbf16>
    %cst = arith.constant dense<0.000000e+00> : vector<32x512xf32>
    %2 = tpu.matmul %0, %1, %cst {dimension_numbers = #tpu.dot_dimension_numbers<[1], [0], [0], [1], [0, 0, 1, 1], [], []>} : vector<32x128xbf16>, vector<128x512xbf16>, vector<32x512xf32> -> vector<32x512xf32>
    %cst_3 = arith.constant 0.000000e+00 : f32
    %3 = vector.broadcast %cst_3 : f32 to vector<32x512xf32>
    %4 = arith.maximumf %2, %3 : vector<32x512xf32>
    %5 = arith.truncf %4 : vector<32x512xf32> to vector<32x512xbf16>
    %c0_4 = arith.constant 0 : index
    %c0_5 = arith.constant 0 : index
    %6 = vector.load %arg3[%c0_4, %c0_5] : memref<128x512xbf16, #tpu.memory_space<vmem>>, vector<128x512xbf16>
    %7 = vector.extract_strided_slice %5 {offsets = [0, 0], sizes = [32, 128], strides = [1, 1]} : vector<32x512xbf16> to vector<32x128xbf16>
    %cst_6 = arith.constant dense<0.000000e+00> : vector<32x512xf32>
    %8 = tpu.matmul %7, %6, %cst_6 {dimension_numbers = #tpu.dot_dimension_numbers<[1], [0], [0], [1], [0, 0, 1, 1], [], []>} : vector<32x128xbf16>, vector<128x512xbf16>, vector<32x512xf32> -> vector<32x512xf32>
    %9 = vector.extract_strided_slice %8 {offsets = [0, 0], sizes = [32, 128], strides = [1, 1]} : vector<32x512xf32> to vector<32x128xf32>
    %10 = vector.extract_strided_slice %8 {offsets = [0, 128], sizes = [32, 128], strides = [1, 1]} : vector<32x512xf32> to vector<32x128xf32>
    %11 = arith.maximumf %9, %10 : vector<32x128xf32>
    %12 = vector.extract_strided_slice %8 {offsets = [0, 256], sizes = [32, 128], strides = [1, 1]} : vector<32x512xf32> to vector<32x128xf32>
    %13 = arith.maximumf %11, %12 : vector<32x128xf32>
    %14 = vector.extract_strided_slice %8 {offsets = [0, 384], sizes = [32, 128], strides = [1, 1]} : vector<32x512xf32> to vector<32x128xf32>
    %15 = arith.maximumf %13, %14 : vector<32x128xf32>
    %16 = vector.extract_strided_slice %5 {offsets = [0, 128], sizes = [32, 128], strides = [1, 1]} : vector<32x512xbf16> to vector<32x128xbf16>
    %cst_7 = arith.constant dense<0.000000e+00> : vector<32x512xf32>
    %17 = tpu.matmul %16, %6, %cst_7 {dimension_numbers = #tpu.dot_dimension_numbers<[1], [0], [0], [1], [0, 0, 1, 1], [], []>} : vector<32x128xbf16>, vector<128x512xbf16>, vector<32x512xf32> -> vector<32x512xf32>
    %18 = vector.extract_strided_slice %17 {offsets = [0, 0], sizes = [32, 128], strides = [1, 1]} : vector<32x512xf32> to vector<32x128xf32>
    %19 = arith.maximumf %15, %18 : vector<32x128xf32>
    %20 = vector.extract_strided_slice %17 {offsets = [0, 128], sizes = [32, 128], strides = [1, 1]} : vector<32x512xf32> to vector<32x128xf32>
    %21 = arith.maximumf %19, %20 : vector<32x128xf32>
    %22 = vector.extract_strided_slice %17 {offsets = [0, 256], sizes = [32, 128], strides = [1, 1]} : vector<32x512xf32> to vector<32x128xf32>
    %23 = arith.maximumf %21, %22 : vector<32x128xf32>
    %24 = vector.extract_strided_slice %17 {offsets = [0, 384], sizes = [32, 128], strides = [1, 1]} : vector<32x512xf32> to vector<32x128xf32>
    %25 = arith.maximumf %23, %24 : vector<32x128xf32>
    %26 = vector.extract_strided_slice %5 {offsets = [0, 256], sizes = [32, 128], strides = [1, 1]} : vector<32x512xbf16> to vector<32x128xbf16>
    %cst_8 = arith.constant dense<0.000000e+00> : vector<32x512xf32>
    %27 = tpu.matmul %26, %6, %cst_8 {dimension_numbers = #tpu.dot_dimension_numbers<[1], [0], [0], [1], [0, 0, 1, 1], [], []>} : vector<32x128xbf16>, vector<128x512xbf16>, vector<32x512xf32> -> vector<32x512xf32>
    %28 = vector.extract_strided_slice %27 {offsets = [0, 0], sizes = [32, 128], strides = [1, 1]} : vector<32x512xf32> to vector<32x128xf32>
    %29 = arith.maximumf %25, %28 : vector<32x128xf32>
    %30 = vector.extract_strided_slice %27 {offsets = [0, 128], sizes = [32, 128], strides = [1, 1]} : vector<32x512xf32> to vector<32x128xf32>
    %31 = arith.maximumf %29, %30 : vector<32x128xf32>
    %32 = vector.extract_strided_slice %27 {offsets = [0, 256], sizes = [32, 128], strides = [1, 1]} : vector<32x512xf32> to vector<32x128xf32>
    %33 = arith.maximumf %31, %32 : vector<32x128xf32>
    %34 = vector.extract_strided_slice %27 {offsets = [0, 384], sizes = [32, 128], strides = [1, 1]} : vector<32x512xf32> to vector<32x128xf32>
    %35 = arith.maximumf %33, %34 : vector<32x128xf32>
    %36 = vector.extract_strided_slice %5 {offsets = [0, 384], sizes = [32, 128], strides = [1, 1]} : vector<32x512xbf16> to vector<32x128xbf16>
    %cst_9 = arith.constant dense<0.000000e+00> : vector<32x512xf32>
    %37 = tpu.matmul %36, %6, %cst_9 {dimension_numbers = #tpu.dot_dimension_numbers<[1], [0], [0], [1], [0, 0, 1, 1], [], []>} : vector<32x128xbf16>, vector<128x512xbf16>, vector<32x512xf32> -> vector<32x512xf32>
    %38 = vector.extract_strided_slice %37 {offsets = [0, 0], sizes = [32, 128], strides = [1, 1]} : vector<32x512xf32> to vector<32x128xf32>
    %39 = arith.maximumf %35, %38 : vector<32x128xf32>
    %40 = vector.extract_strided_slice %37 {offsets = [0, 128], sizes = [32, 128], strides = [1, 1]} : vector<32x512xf32> to vector<32x128xf32>
    %41 = arith.maximumf %39, %40 : vector<32x128xf32>
    %42 = vector.extract_strided_slice %37 {offsets = [0, 256], sizes = [32, 128], strides = [1, 1]} : vector<32x512xf32> to vector<32x128xf32>
    %43 = arith.maximumf %41, %42 : vector<32x128xf32>
    %44 = vector.extract_strided_slice %37 {offsets = [0, 384], sizes = [32, 128], strides = [1, 1]} : vector<32x512xf32> to vector<32x128xf32>
    %45 = arith.maximumf %43, %44 : vector<32x128xf32>
    %c0_10 = arith.constant 0 : index
    %c0_11 = arith.constant 0 : index
    %46 = vector.load %arg4[%c0_10, %c0_11] : memref<1x128xf32, #tpu.memory_space<vmem>>, vector<1x128xf32>
    %47 = vector.broadcast %46 : vector<1x128xf32> to vector<32x128xf32>
    %48 = arith.addf %45, %47 : vector<32x128xf32>
    %cst_12 = arith.constant 0.000000e+00 : f32
    %49 = vector.broadcast %cst_12 : f32 to vector<32x128xf32>
    %50 = arith.maximumf %48, %49 : vector<32x128xf32>
    %c0_13 = arith.constant 0 : index
    %c0_14 = arith.constant 0 : index
    %51 = vector.load %arg5[%c0_13, %c0_14] : memref<32x128xf32, #tpu.memory_space<vmem>>, vector<32x128xf32>
    tpu.vector_store %arg5[%c0_13, %c0_14], %50 {strides = array<i32>} : memref<32x128xf32, #tpu.memory_space<vmem>>, vector<32x128xf32>,
    return
  }
  func.func @transform_0(%arg0: i32) -> (i32, i32) {
    %c0_i32 = arith.constant 0 : i32
    %c0_i32_0 = arith.constant 0 : i32
    return %arg0, %c0_i32 : i32, i32
  }
  func.func @transform_1(%arg0: i32) -> (i32, i32) {
    %c0_i32 = arith.constant 0 : i32
    %c0_i32_0 = arith.constant 0 : i32
    %c0_i32_1 = arith.constant 0 : i32
    return %c0_i32, %c0_i32_0 : i32, i32
  }
  func.func @transform_2(%arg0: i32) -> (i32, i32) {
    %c0_i32 = arith.constant 0 : i32
    %c0_i32_0 = arith.constant 0 : i32
    %c0_i32_1 = arith.constant 0 : i32
    return %c0_i32, %c0_i32_0 : i32, i32
  }
  func.func @transform_3(%arg0: i32) -> (i32, i32) {
    %c0_i32 = arith.constant 0 : i32
    %c0_i32_0 = arith.constant 0 : i32
    %c0_i32_1 = arith.constant 0 : i32
    return %c0_i32, %c0_i32_0 : i32, i32
  }
  func.func @transform_4(%arg0: i32) -> (i32, i32) {
    %c0_i32 = arith.constant 0 : i32
    %c0_i32_0 = arith.constant 0 : i32
    return %arg0, %c0_i32 : i32, i32
  }
}

</mosaic_0001>

<llo_original>
// kernel: sa_module_forward.1
$region0: #{sa_module_forward.1}
  #allocation0 [shape = 'u32[]', space=smem, size = 0x4, offset = 0x4, fixed_abs, tag = 'smem constant byte address 0x4 - core index']
  #allocation1 [shape = 'u32[144,128]{1,0:T(1,128)}', space=vmem, size = 0x12000, scoped, tag = 'internal scratch']
  %s0 = inlined_call_operand.vmem [shape: bf16[32,128], index: 0, kind: input, shape index: {}]
  %s1 = inlined_call_operand.vmem [shape: bf16[128,512], index: 1, kind: input, shape index: {}]
  %s2 = inlined_call_operand.vmem [shape: bf16[128,512], index: 2, kind: input, shape index: {}]
  %s3 = inlined_call_operand.vmem [shape: f32[1,128], index: 3, kind: input, shape index: {}]
  %s4 = inlined_call_operand.hbm [shape: f32[32,128], index: 4, kind: output, shape index: {}]
  %s5 = sld [smem:[#allocation0]]
  $region26: #{sa_module_forward.1} parent=0
    _
  %s7 = ssub.s32 1, %s5
  %s8 = scalar_select 0, %s7, %s5
  $region1: #{sa_module_forward.1} parent=0
    #allocation2 [shape = 'u8[16384]{0}', space=vmem, size = 0x4000, scoped, tag = 'output window, operand 0, single buffered']
    #allocation3 [shape = 's32[1]{0}', space=sflag, size = 0x4, scoped, tag = 'scoped memory for sa_module_forward.1']
    %9 = vsyncpa [#allocation3], 0
    // Predicated region
    $region2: #{sa_module_forward.1} parent=1 // pred_check
      _
    $region3: #{sa_module_forward.1} parent=1 // pred_check_branch
      %11 = sbr.rel (0) target = $region5
    $region4: #{sa_module_forward.1} parent=1 // pred_region
      _
    $region5: #{sa_module_forward.1} parent=1 // pred_fallthru
      _
    // Predicated region
    $region6: #{sa_module_forward.1} parent=1 // pred_check
      _
    $region7: #{sa_module_forward.1} parent=1 // pred_check_branch
      %13 = sbr.rel (0) target = $region9
    $region8: #{sa_module_forward.1} parent=1 // pred_region
      _
    $region9: #{sa_module_forward.1} parent=1 // pred_fallthru
      _
    // Predicated region
    $region10: #{sa_module_forward.1} parent=1 // pred_check
      _
    $region11: #{sa_module_forward.1} parent=1 // pred_check_branch
      %15 = sbr.rel (0) target = $region13
    $region12: #{sa_module_forward.1} parent=1 // pred_region
      _
    $region13: #{sa_module_forward.1} parent=1 // pred_fallthru
      _
    // Predicated region
    $region14: #{sa_module_forward.1} parent=1 // pred_check
      _
    $region15: #{sa_module_forward.1} parent=1 // pred_check_branch
      %17 = sbr.rel (0) target = $region17
    $region16: #{sa_module_forward.1} parent=1 // pred_region
      _
    $region17: #{sa_module_forward.1} parent=1 // pred_fallthru
      _
    %v19 = vld [vmem:[%s0] sm:$0xf]
    %v20 = vld [vmem:[%s0 + $0x4] sm:$0xf]
    %v21 = vld [vmem:[%s0 + $0x8] sm:$0xf]
    %v22 = vld [vmem:[%s0 + $0xc] sm:$0xf]
    %v23 = vld [vmem:[%s1] sm:$0xff]
    %v24 = vld [vmem:[%s1 + $0x8] sm:$0xff]
    %v25 = vld [vmem:[%s1 + $0x10] sm:$0xff]
    %v26 = vld [vmem:[%s1 + $0x18] sm:$0xff]
    %v27 = vld [vmem:[%s1 + $0x20] sm:$0xff]
    %v28 = vld [vmem:[%s1 + $0x28] sm:$0xff]
    %v29 = vld [vmem:[%s1 + $0x30] sm:$0xff]
    %v30 = vld [vmem:[%s1 + $0x38] sm:$0xff]
    %v31 = vld [vmem:[%s1 + $0x40] sm:$0xff]
    %v32 = vld [vmem:[%s1 + $0x48] sm:$0xff]
    %v33 = vld [vmem:[%s1 + $0x50] sm:$0xff]
    %v34 = vld [vmem:[%s1 + $0x58] sm:$0xff]
    %v35 = vld [vmem:[%s1 + $0x60] sm:$0xff]
    %v36 = vld [vmem:[%s1 + $0x68] sm:$0xff]
    %v37 = vld [vmem:[%s1 + $0x70] sm:$0xff]
    %v38 = vld [vmem:[%s1 + $0x78] sm:$0xff]
    %v39 = vld [vmem:[%s1 + $0x80] sm:$0xff]
    %v40 = vld [vmem:[%s1 + $0x88] sm:$0xff]
    %v41 = vld [vmem:[%s1 + $0x90] sm:$0xff]
    %v42 = vld [vmem:[%s1 + $0x98] sm:$0xff]
    %v43 = vld [vmem:[%s1 + $0xa0] sm:$0xff]
    %v44 = vld [vmem:[%s1 + $0xa8] sm:$0xff]
    %v45 = vld [vmem:[%s1 + $0xb0] sm:$0xff]
    %v46 = vld [vmem:[%s1 + $0xb8] sm:$0xff]
    %v47 = vld [vmem:[%s1 + $0xc0] sm:$0xff]
    %v48 = vld [vmem:[%s1 + $0xc8] sm:$0xff]
    %v49 = vld [vmem:[%s1 + $0xd0] sm:$0xff]
    %v50 = vld [vmem:[%s1 + $0xd8] sm:$0xff]
    %v51 = vld [vmem:[%s1 + $0xe0] sm:$0xff]
    %v52 = vld [vmem:[%s1 + $0xe8] sm:$0xff]
    %v53 = vld [vmem:[%s1 + $0xf0] sm:$0xff]
    %v54 = vld [vmem:[%s1 + $0xf8] sm:$0xff]
    %v59 = vunpack.c.l.b16 %v19
    %v60 = vunpack.c.l.b16 %v20
    %v61 = vunpack.c.l.b16 %v21
    %v62 = vunpack.c.l.b16 %v22
    %v63 = vpack.c.b16 %v60, %v59
    %v64 = vpack.c.b16 %v62, %v61
    %v99 = vunpack.c.l.b16 %v23
    %v100 = vunpack.c.h.b16 %v23
    %v101 = vunpack.c.l.b16 %v24
    %v102 = vunpack.c.h.b16 %v24
    %v103 = vunpack.c.l.b16 %v25
    %v104 = vunpack.c.h.b16 %v25
    %v105 = vunpack.c.l.b16 %v26
    %v106 = vunpack.c.h.b16 %v26
    %v107 = vunpack.c.l.b16 %v27
    %v108 = vunpack.c.h.b16 %v27
    %v109 = vunpack.c.l.b16 %v28
    %v110 = vunpack.c.h.b16 %v28
    %v111 = vunpack.c.l.b16 %v29
    %v112 = vunpack.c.h.b16 %v29
    %v113 = vunpack.c.l.b16 %v30
    %v114 = vunpack.c.h.b16 %v30
    %v115 = vunpack.c.l.b16 %v31
    %v116 = vunpack.c.h.b16 %v31
    %v117 = vunpack.c.l.b16 %v32
    %v118 = vunpack.c.h.b16 %v32
    %v119 = vunpack.c.l.b16 %v33
    %v120 = vunpack.c.h.b16 %v33
    %v121 = vunpack.c.l.b16 %v34
    %v122 = vunpack.c.h.b16 %v34
    %v123 = vunpack.c.l.b16 %v35
    %v124 = vunpack.c.h.b16 %v35
    %v125 = vunpack.c.l.b16 %v36
    %v126 = vunpack.c.h.b16 %v36
    %v127 = vunpack.c.l.b16 %v37
    %v128 = vunpack.c.h.b16 %v37
    %v129 = vunpack.c.l.b16 %v38
    %v130 = vunpack.c.h.b16 %v38
    %v131 = vunpack.c.l.b16 %v39
    %v132 = vunpack.c.h.b16 %v39
    %v133 = vunpack.c.l.b16 %v40
    %v134 = vunpack.c.h.b16 %v40
    %v135 = vunpack.c.l.b16 %v41
    %v136 = vunpack.c.h.b16 %v41
    %v137 = vunpack.c.l.b16 %v42
    %v138 = vunpack.c.h.b16 %v42
    %v139 = vunpack.c.l.b16 %v43
    %v140 = vunpack.c.h.b16 %v43
    %v141 = vunpack.c.l.b16 %v44
    %v142 = vunpack.c.h.b16 %v44
    %v143 = vunpack.c.l.b16 %v45
    %v144 = vunpack.c.h.b16 %v45
    %v145 = vunpack.c.l.b16 %v46
    %v146 = vunpack.c.h.b16 %v46
    %v147 = vunpack.c.l.b16 %v47
    %v148 = vunpack.c.h.b16 %v47
    %v149 = vunpack.c.l.b16 %v48
    %v150 = vunpack.c.h.b16 %v48
    %v151 = vunpack.c.l.b16 %v49
    %v152 = vunpack.c.h.b16 %v49
    %v153 = vunpack.c.l.b16 %v50
    %v154 = vunpack.c.h.b16 %v50
    %v155 = vunpack.c.l.b16 %v51
    %v156 = vunpack.c.h.b16 %v51
    %v157 = vunpack.c.l.b16 %v52
    %v158 = vunpack.c.h.b16 %v52
    %v159 = vunpack.c.l.b16 %v53
    %v160 = vunpack.c.h.b16 %v53
    %v161 = vunpack.c.l.b16 %v54
    %v162 = vunpack.c.h.b16 %v54
    %v163 = vpack.c.b16 %v103, %v99
    %v164 = vpack.c.b16 %v104, %v100
    %v165 = vpack.c.b16 %v105, %v101
    %v166 = vpack.c.b16 %v106, %v102
    %v167 = vpack.c.b16 %v111, %v107
    %v168 = vpack.c.b16 %v112, %v108
    %v169 = vpack.c.b16 %v113, %v109
    %v170 = vpack.c.b16 %v114, %v110
    %v171 = vpack.c.b16 %v119, %v115
    %v172 = vpack.c.b16 %v120, %v116
    %v173 = vpack.c.b16 %v121, %v117
    %v174 = vpack.c.b16 %v122, %v118
    %v175 = vpack.c.b16 %v127, %v123
    %v176 = vpack.c.b16 %v128, %v124
    %v177 = vpack.c.b16 %v129, %v125
    %v178 = vpack.c.b16 %v130, %v126
    %v179 = vpack.c.b16 %v135, %v131
    %v180 = vpack.c.b16 %v136, %v132
    %v181 = vpack.c.b16 %v137, %v133
    %v182 = vpack.c.b16 %v138, %v134
    %v183 = vpack.c.b16 %v143, %v139
    %v184 = vpack.c.b16 %v144, %v140
    %v185 = vpack.c.b16 %v145, %v141
    %v186 = vpack.c.b16 %v146, %v142
    %v187 = vpack.c.b16 %v151, %v147
    %v188 = vpack.c.b16 %v152, %v148
    %v189 = vpack.c.b16 %v153, %v149
    %v190 = vpack.c.b16 %v154, %v150
    %v191 = vpack.c.b16 %v159, %v155
    %v192 = vpack.c.b16 %v160, %v156
    %v193 = vpack.c.b16 %v161, %v157
    %v194 = vpack.c.b16 %v162, %v158
    %227 = vmatprep.subr.bf16.mxu0 %v164
    %228 = vmatpush1.bf16.msra.mxu0 %v163
    %229 = vmatprep.subr.bf16.mxu0 %v168
    %230 = vmatpush1.bf16.msra.mxu0 %v167
    %231 = vmatprep.subr.bf16.mxu0 %v172
    %232 = vmatpush1.bf16.msra.mxu0 %v171
    %233 = vmatprep.subr.bf16.mxu0 %v176
    %234 = vmatpush1.bf16.msra.mxu0 %v175
    %235 = vmatprep.subr.bf16.mxu0 %v180
    %236 = vmatpush1.bf16.msra.mxu0 %v179
    %237 = vmatprep.subr.bf16.mxu0 %v184
    %238 = vmatpush1.bf16.msra.mxu0 %v183
    %239 = vmatprep.subr.bf16.mxu0 %v188
    %240 = vmatpush1.bf16.msra.mxu0 %v187
    %241 = vmatprep.subr.bf16.mxu0 %v192
    %242 = vmatpush1.bf16.msra.mxu0 %v191
    %243 = vmatprep.subr.bf16.mxu0 0
    %244 = vmatpush1.bf16.msra.mxu0 0
    %245 = vmatprep.subr.bf16.mxu0 0
    %246 = vmatpush1.bf16.msra.mxu0 0
    %247 = vmatprep.subr.bf16.mxu0 0
    %248 = vmatpush1.bf16.msra.mxu0 0
    %249 = vmatprep.subr.bf16.mxu0 0
    %250 = vmatpush1.bf16.msra.mxu0 0
    %251 = vmatprep.subr.bf16.mxu0 0
    %252 = vmatpush1.bf16.msra.mxu0 0
    %253 = vmatprep.subr.bf16.mxu0 0
    %254 = vmatpush1.bf16.msra.mxu0 0
    %255 = vmatprep.subr.bf16.mxu0 0
    %256 = vmatpush1.bf16.msra.mxu0 0
    %257 = vmatprep.subr.bf16.mxu0 0
    %258 = vmatpush1.bf16.msra.mxu0 0
    %259 = vmatprep.mubr.bf16.mxu0 0
    %260 = vmatmul.mubr.bf16.gmra.mrb[0].mxu0 %v63
    %v261 = vpop.f32.mrb[0].mxu0
    %v262 = vadd.f32 0.0, %v261
    %v263 = vpop.f32.mrb[0].mxu0
    %v264 = vadd.f32 0.0, %v263
    %v265 = vpop.f32.mrb[0].mxu0
    %v266 = vadd.f32 0.0, %v265
    %v267 = vpop.f32.mrb[0].mxu0
    %v268 = vadd.f32 0.0, %v267
    %269 = vmatprep.mubr.bf16.mxu0 0
    %270 = vmatmul.mubr.bf16.gmra.mrb[0].mxu0 %v64
    %v271 = vpop.f32.mrb[0].mxu0
    %v272 = vadd.f32 0.0, %v271
    %v273 = vpop.f32.mrb[0].mxu0
    %v274 = vadd.f32 0.0, %v273
    %v275 = vpop.f32.mrb[0].mxu0
    %v276 = vadd.f32 0.0, %v275
    %v277 = vpop.f32.mrb[0].mxu0
    %v278 = vadd.f32 0.0, %v277
    %279 = vdwg.mxu0
    %280 = vmatprep.subr.bf16.mxu0 %v166
    %281 = vmatpush1.bf16.msra.mxu0 %v165
    %282 = vmatprep.subr.bf16.mxu0 %v170
    %283 = vmatpush1.bf16.msra.mxu0 %v169
    %284 = vmatprep.subr.bf16.mxu0 %v174
    %285 = vmatpush1.bf16.msra.mxu0 %v173
    %286 = vmatprep.subr.bf16.mxu0 %v178
    %287 = vmatpush1.bf16.msra.mxu0 %v177
    %288 = vmatprep.subr.bf16.mxu0 %v182
    %289 = vmatpush1.bf16.msra.mxu0 %v181
    %290 = vmatprep.subr.bf16.mxu0 %v186
    %291 = vmatpush1.bf16.msra.mxu0 %v185
    %292 = vmatprep.subr.bf16.mxu0 %v190
    %293 = vmatpush1.bf16.msra.mxu0 %v189
    %294 = vmatprep.subr.bf16.mxu0 %v194
    %295 = vmatpush1.bf16.msra.mxu0 %v193
    %296 = vmatprep.subr.bf16.mxu0 0
    %297 = vmatpush1.bf16.msra.mxu0 0
    %298 = vmatprep.subr.bf16.mxu0 0
    %299 = vmatpush1.bf16.msra.mxu0 0
    %300 = vmatprep.subr.bf16.mxu0 0
    %301 = vmatpush1.bf16.msra.mxu0 0
    %302 = vmatprep.subr.bf16.mxu0 0
    %303 = vmatpush1.bf16.msra.mxu0 0
    %304 = vmatprep.subr.bf16.mxu0 0
    %305 = vmatpush1.bf16.msra.mxu0 0
    %306 = vmatprep.subr.bf16.mxu0 0
    %307 = vmatpush1.bf16.msra.mxu0 0
    %308 = vmatprep.subr.bf16.mxu0 0
    %309 = vmatpush1.bf16.msra.mxu0 0
    %310 = vmatprep.subr.bf16.mxu0 0
    %311 = vmatpush1.bf16.msra.mxu0 0
    %312 = vmatprep.mubr.bf16.mxu0 0
    %313 = vmatmul.mubr.bf16.gmra.mrb[0].mxu0 %v63
    %v314 = vpop.f32.mrb[0].mxu0
    %v315 = vadd.f32 0.0, %v314
    %v316 = vpop.f32.mrb[0].mxu0
    %v317 = vadd.f32 0.0, %v316
    %v318 = vpop.f32.mrb[0].mxu0
    %v319 = vadd.f32 0.0, %v318
    %v320 = vpop.f32.mrb[0].mxu0
    %v321 = vadd.f32 0.0, %v320
    %322 = vmatprep.mubr.bf16.mxu0 0
    %323 = vmatmul.mubr.bf16.gmra.mrb[0].mxu0 %v64
    %v324 = vpop.f32.mrb[0].mxu0
    %v325 = vadd.f32 0.0, %v324
    %v326 = vpop.f32.mrb[0].mxu0
    %v327 = vadd.f32 0.0, %v326
    %v328 = vpop.f32.mrb[0].mxu0
    %v329 = vadd.f32 0.0, %v328
    %v330 = vpop.f32.mrb[0].mxu0
    %v331 = vadd.f32 0.0, %v330
    %332 = vdwg.mxu0
    %v333 = vmax.f32 %v262, 0.0
    %v334 = vmax.f32 %v264, 0.0
    %v335 = vmax.f32 %v315, 0.0
    %v336 = vmax.f32 %v317, 0.0
    %v337 = vmax.f32 %v266, 0.0
    %v338 = vmax.f32 %v268, 0.0
    %v339 = vmax.f32 %v319, 0.0
    %v340 = vmax.f32 %v321, 0.0
    %v341 = vmax.f32 %v272, 0.0
    %v342 = vmax.f32 %v274, 0.0
    %v343 = vmax.f32 %v325, 0.0
    %v344 = vmax.f32 %v327, 0.0
    %v345 = vmax.f32 %v276, 0.0
    %v346 = vmax.f32 %v278, 0.0
    %v347 = vmax.f32 %v329, 0.0
    %v348 = vmax.f32 %v331, 0.0
    %v349 = vpack.c.bf16 %v337, %v333
    %v350 = vpack.c.bf16 %v338, %v334
    %v351 = vpack.c.bf16 %v339, %v335
    %v352 = vpack.c.bf16 %v340, %v336
    %v353 = vpack.c.bf16 %v345, %v341
    %v354 = vpack.c.bf16 %v346, %v342
    %v355 = vpack.c.bf16 %v347, %v343
    %v356 = vpack.c.bf16 %v348, %v344
    %v357 = vld [vmem:[%s2] sm:$0xff]
    %v358 = vld [vmem:[%s2 + $0x8] sm:$0xff]
    %v359 = vld [vmem:[%s2 + $0x10] sm:$0xff]
    %v360 = vld [vmem:[%s2 + $0x18] sm:$0xff]
    %v361 = vld [vmem:[%s2 + $0x20] sm:$0xff]
    %v362 = vld [vmem:[%s2 + $0x28] sm:$0xff]
    %v363 = vld [vmem:[%s2 + $0x30] sm:$0xff]
    %v364 = vld [vmem:[%s2 + $0x38] sm:$0xff]
    %v365 = vld [vmem:[%s2 + $0x40] sm:$0xff]
    %v366 = vld [vmem:[%s2 + $0x48] sm:$0xff]
    %v367 = vld [vmem:[%s2 + $0x50] sm:$0xff]
    %v368 = vld [vmem:[%s2 + $0x58] sm:$0xff]
    %v369 = vld [vmem:[%s2 + $0x60] sm:$0xff]
    %v370 = vld [vmem:[%s2 + $0x68] sm:$0xff]
    %v371 = vld [vmem:[%s2 + $0x70] sm:$0xff]
    %v372 = vld [vmem:[%s2 + $0x78] sm:$0xff]
    %v373 = vld [vmem:[%s2 + $0x80] sm:$0xff]
    %v374 = vld [vmem:[%s2 + $0x88] sm:$0xff]
    %v375 = vld [vmem:[%s2 + $0x90] sm:$0xff]
    %v376 = vld [vmem:[%s2 + $0x98] sm:$0xff]
    %v377 = vld [vmem:[%s2 + $0xa0] sm:$0xff]
    %v378 = vld [vmem:[%s2 + $0xa8] sm:$0xff]
    %v379 = vld [vmem:[%s2 + $0xb0] sm:$0xff]
    %v380 = vld [vmem:[%s2 + $0xb8] sm:$0xff]
    %v381 = vld [vmem:[%s2 + $0xc0] sm:$0xff]
    %v382 = vld [vmem:[%s2 + $0xc8] sm:$0xff]
    %v383 = vld [vmem:[%s2 + $0xd0] sm:$0xff]
    %v384 = vld [vmem:[%s2 + $0xd8] sm:$0xff]
    %v385 = vld [vmem:[%s2 + $0xe0] sm:$0xff]
    %v386 = vld [vmem:[%s2 + $0xe8] sm:$0xff]
    %v387 = vld [vmem:[%s2 + $0xf0] sm:$0xff]
    %v388 = vld [vmem:[%s2 + $0xf8] sm:$0xff]
    %v421 = vunpack.c.l.b16 %v357
    %v422 = vunpack.c.h.b16 %v357
    %v423 = vunpack.c.l.b16 %v358
    %v424 = vunpack.c.h.b16 %v358
    %v425 = vunpack.c.l.b16 %v359
    %v426 = vunpack.c.h.b16 %v359
    %v427 = vunpack.c.l.b16 %v360
    %v428 = vunpack.c.h.b16 %v360
    %v429 = vunpack.c.l.b16 %v361
    %v430 = vunpack.c.h.b16 %v361
    %v431 = vunpack.c.l.b16 %v362
    %v432 = vunpack.c.h.b16 %v362
    %v433 = vunpack.c.l.b16 %v363
    %v434 = vunpack.c.h.b16 %v363
    %v435 = vunpack.c.l.b16 %v364
    %v436 = vunpack.c.h.b16 %v364
    %v437 = vunpack.c.l.b16 %v365
    %v438 = vunpack.c.h.b16 %v365
    %v439 = vunpack.c.l.b16 %v366
    %v440 = vunpack.c.h.b16 %v366
    %v441 = vunpack.c.l.b16 %v367
    %v442 = vunpack.c.h.b16 %v367
    %v443 = vunpack.c.l.b16 %v368
    %v444 = vunpack.c.h.b16 %v368
    %v445 = vunpack.c.l.b16 %v369
    %v446 = vunpack.c.h.b16 %v369
    %v447 = vunpack.c.l.b16 %v370
    %v448 = vunpack.c.h.b16 %v370
    %v449 = vunpack.c.l.b16 %v371
    %v450 = vunpack.c.h.b16 %v371
    %v451 = vunpack.c.l.b16 %v372
    %v452 = vunpack.c.h.b16 %v372
    %v453 = vunpack.c.l.b16 %v373
    %v454 = vunpack.c.h.b16 %v373
    %v455 = vunpack.c.l.b16 %v374
    %v456 = vunpack.c.h.b16 %v374
    %v457 = vunpack.c.l.b16 %v375
    %v458 = vunpack.c.h.b16 %v375
    %v459 = vunpack.c.l.b16 %v376
    %v460 = vunpack.c.h.b16 %v376
    %v461 = vunpack.c.l.b16 %v377
    %v462 = vunpack.c.h.b16 %v377
    %v463 = vunpack.c.l.b16 %v378
    %v464 = vunpack.c.h.b16 %v378
    %v465 = vunpack.c.l.b16 %v379
    %v466 = vunpack.c.h.b16 %v379
    %v467 = vunpack.c.l.b16 %v380
    %v468 = vunpack.c.h.b16 %v380
    %v469 = vunpack.c.l.b16 %v381
    %v470 = vunpack.c.h.b16 %v381
    %v471 = vunpack.c.l.b16 %v382
    %v472 = vunpack.c.h.b16 %v382
    %v473 = vunpack.c.l.b16 %v383
    %v474 = vunpack.c.h.b16 %v383
    %v475 = vunpack.c.l.b16 %v384
    %v476 = vunpack.c.h.b16 %v384
    %v477 = vunpack.c.l.b16 %v385
    %v478 = vunpack.c.h.b16 %v385
    %v479 = vunpack.c.l.b16 %v386
    %v480 = vunpack.c.h.b16 %v386
    %v481 = vunpack.c.l.b16 %v387
    %v482 = vunpack.c.h.b16 %v387
    %v483 = vunpack.c.l.b16 %v388
    %v484 = vunpack.c.h.b16 %v388
    %v485 = vpack.c.b16 %v425, %v421
    %v486 = vpack.c.b16 %v426, %v422
    %v487 = vpack.c.b16 %v427, %v423
    %v488 = vpack.c.b16 %v428, %v424
    %v489 = vpack.c.b16 %v433, %v429
    %v490 = vpack.c.b16 %v434, %v430
    %v491 = vpack.c.b16 %v435, %v431
    %v492 = vpack.c.b16 %v436, %v432
    %v493 = vpack.c.b16 %v441, %v437
    %v494 = vpack.c.b16 %v442, %v438
    %v495 = vpack.c.b16 %v443, %v439
    %v496 = vpack.c.b16 %v444, %v440
    %v497 = vpack.c.b16 %v449, %v445
    %v498 = vpack.c.b16 %v450, %v446
    %v499 = vpack.c.b16 %v451, %v447
    %v500 = vpack.c.b16 %v452, %v448
    %v501 = vpack.c.b16 %v457, %v453
    %v502 = vpack.c.b16 %v458, %v454
    %v503 = vpack.c.b16 %v459, %v455
    %v504 = vpack.c.b16 %v460, %v456
    %v505 = vpack.c.b16 %v465, %v461
    %v506 = vpack.c.b16 %v466, %v462
    %v507 = vpack.c.b16 %v467, %v463
    %v508 = vpack.c.b16 %v468, %v464
    %v509 = vpack.c.b16 %v473, %v469
    %v510 = vpack.c.b16 %v474, %v470
    %v511 = vpack.c.b16 %v475, %v471
    %v512 = vpack.c.b16 %v476, %v472
    %v513 = vpack.c.b16 %v481, %v477
    %v514 = vpack.c.b16 %v482, %v478
    %v515 = vpack.c.b16 %v483, %v479
    %v516 = vpack.c.b16 %v484, %v480
    %549 = vmatprep.subr.bf16.mxu0 %v486
    %550 = vmatpush1.bf16.msra.mxu0 %v485
    %551 = vmatprep.subr.bf16.mxu0 %v490
    %552 = vmatpush1.bf16.msra.mxu0 %v489
    %553 = vmatprep.subr.bf16.mxu0 %v494
    %554 = vmatpush1.bf16.msra.mxu0 %v493
    %555 = vmatprep.subr.bf16.mxu0 %v498
    %556 = vmatpush1.bf16.msra.mxu0 %v497
    %557 = vmatprep.subr.bf16.mxu0 %v502
    %558 = vmatpush1.bf16.msra.mxu0 %v501
    %559 = vmatprep.subr.bf16.mxu0 %v506
    %560 = vmatpush1.bf16.msra.mxu0 %v505
    %561 = vmatprep.subr.bf16.mxu0 %v510
    %562 = vmatpush1.bf16.msra.mxu0 %v509
    %563 = vmatprep.subr.bf16.mxu0 %v514
    %564 = vmatpush1.bf16.msra.mxu0 %v513
    %565 = vmatprep.subr.bf16.mxu0 0
    %566 = vmatpush1.bf16.msra.mxu0 0
    %567 = vmatprep.subr.bf16.mxu0 0
    %568 = vmatpush1.bf16.msra.mxu0 0
    %569 = vmatprep.subr.bf16.mxu0 0
    %570 = vmatpush1.bf16.msra.mxu0 0
    %571 = vmatprep.subr.bf16.mxu0 0
    %572 = vmatpush1.bf16.msra.mxu0 0
    %573 = vmatprep.subr.bf16.mxu0 0
    %574 = vmatpush1.bf16.msra.mxu0 0
    %575 = vmatprep.subr.bf16.mxu0 0
    %576 = vmatpush1.bf16.msra.mxu0 0
    %577 = vmatprep.subr.bf16.mxu0 0
    %578 = vmatpush1.bf16.msra.mxu0 0
    %579 = vmatprep.subr.bf16.mxu0 0
    %580 = vmatpush1.bf16.msra.mxu0 0
    %581 = vmatprep.mubr.bf16.mxu0 0
    %582 = vmatmul.mubr.bf16.gmra.mrb[0].mxu0 %v349
    %v583 = vpop.f32.mrb[0].mxu0
    %v584 = vadd.f32 0.0, %v583
    %v585 = vpop.f32.mrb[0].mxu0
    %v586 = vadd.f32 0.0, %v585
    %v587 = vpop.f32.mrb[0].mxu0
    %v588 = vadd.f32 0.0, %v587
    %v589 = vpop.f32.mrb[0].mxu0
    %v590 = vadd.f32 0.0, %v589
    %591 = vmatprep.mubr.bf16.mxu0 0
    %592 = vmatmul.mubr.bf16.gmra.mrb[0].mxu0 %v353
    %v593 = vpop.f32.mrb[0].mxu0
    %v594 = vadd.f32 0.0, %v593
    %v595 = vpop.f32.mrb[0].mxu0
    %v596 = vadd.f32 0.0, %v595
    %v597 = vpop.f32.mrb[0].mxu0
    %v598 = vadd.f32 0.0, %v597
    %v599 = vpop.f32.mrb[0].mxu0
    %v600 = vadd.f32 0.0, %v599
    %601 = vdwg.mxu0
    %602 = vmatprep.subr.bf16.mxu0 %v488
    %603 = vmatpush1.bf16.msra.mxu0 %v487
    %604 = vmatprep.subr.bf16.mxu0 %v492
    %605 = vmatpush1.bf16.msra.mxu0 %v491
    %606 = vmatprep.subr.bf16.mxu0 %v496
    %607 = vmatpush1.bf16.msra.mxu0 %v495
    %608 = vmatprep.subr.bf16.mxu0 %v500
    %609 = vmatpush1.bf16.msra.mxu0 %v499
    %610 = vmatprep.subr.bf16.mxu0 %v504
    %611 = vmatpush1.bf16.msra.mxu0 %v503
    %612 = vmatprep.subr.bf16.mxu0 %v508
    %613 = vmatpush1.bf16.msra.mxu0 %v507
    %614 = vmatprep.subr.bf16.mxu0 %v512
    %615 = vmatpush1.bf16.msra.mxu0 %v511
    %616 = vmatprep.subr.bf16.mxu0 %v516
    %617 = vmatpush1.bf16.msra.mxu0 %v515
    %618 = vmatprep.subr.bf16.mxu0 0
    %619 = vmatpush1.bf16.msra.mxu0 0
    %620 = vmatprep.subr.bf16.mxu0 0
    %621 = vmatpush1.bf16.msra.mxu0 0
    %622 = vmatprep.subr.bf16.mxu0 0
    %623 = vmatpush1.bf16.msra.mxu0 0
    %624 = vmatprep.subr.bf16.mxu0 0
    %625 = vmatpush1.bf16.msra.mxu0 0
    %626 = vmatprep.subr.bf16.mxu0 0
    %627 = vmatpush1.bf16.msra.mxu0 0
    %628 = vmatprep.subr.bf16.mxu0 0
    %629 = vmatpush1.bf16.msra.mxu0 0
    %630 = vmatprep.subr.bf16.mxu0 0
    %631 = vmatpush1.bf16.msra.mxu0 0
    %632 = vmatprep.subr.bf16.mxu0 0
    %633 = vmatpush1.bf16.msra.mxu0 0
    %634 = vmatprep.mubr.bf16.mxu0 0
    %635 = vmatmul.mubr.bf16.gmra.mrb[0].mxu0 %v349
    %v636 = vpop.f32.mrb[0].mxu0
    %v637 = vadd.f32 0.0, %v636
    %v638 = vpop.f32.mrb[0].mxu0
    %v639 = vadd.f32 0.0, %v638
    %v640 = vpop.f32.mrb[0].mxu0
    %v641 = vadd.f32 0.0, %v640
    %v642 = vpop.f32.mrb[0].mxu0
    %v643 = vadd.f32 0.0, %v642
    %644 = vmatprep.mubr.bf16.mxu0 0
    %645 = vmatmul.mubr.bf16.gmra.mrb[0].mxu0 %v353
    %v646 = vpop.f32.mrb[0].mxu0
    %v647 = vadd.f32 0.0, %v646
    %v648 = vpop.f32.mrb[0].mxu0
    %v649 = vadd.f32 0.0, %v648
    %v650 = vpop.f32.mrb[0].mxu0
    %v651 = vadd.f32 0.0, %v650
    %v652 = vpop.f32.mrb[0].mxu0
    %v653 = vadd.f32 0.0, %v652
    %654 = vdwg.mxu0
    %v655 = vmax.f32 %v584, %v586
    %v656 = vmax.f32 %v588, %v590
    %v657 = vmax.f32 %v594, %v596
    %v658 = vmax.f32 %v598, %v600
    %v659 = vmax.f32 %v655, %v637
    %v660 = vmax.f32 %v656, %v641
    %v661 = vmax.f32 %v657, %v647
    %v662 = vmax.f32 %v658, %v651
    %v663 = vmax.f32 %v659, %v639
    %v664 = vmax.f32 %v660, %v643
    %v665 = vmax.f32 %v661, %v649
    %v666 = vmax.f32 %v662, %v653
    %667 = vmatprep.subr.bf16.mxu0 %v486
    %668 = vmatpush1.bf16.msra.mxu0 %v485
    %669 = vmatprep.subr.bf16.mxu0 %v490
    %670 = vmatpush1.bf16.msra.mxu0 %v489
    %671 = vmatprep.subr.bf16.mxu0 %v494
    %672 = vmatpush1.bf16.msra.mxu0 %v493
    %673 = vmatprep.subr.bf16.mxu0 %v498
    %674 = vmatpush1.bf16.msra.mxu0 %v497
    %675 = vmatprep.subr.bf16.mxu0 %v502
    %676 = vmatpush1.bf16.msra.mxu0 %v501
    %677 = vmatprep.subr.bf16.mxu0 %v506
    %678 = vmatpush1.bf16.msra.mxu0 %v505
    %679 = vmatprep.subr.bf16.mxu0 %v510
    %680 = vmatpush1.bf16.msra.mxu0 %v509
    %681 = vmatprep.subr.bf16.mxu0 %v514
    %682 = vmatpush1.bf16.msra.mxu0 %v513
    %683 = vmatprep.subr.bf16.mxu0 0
    %684 = vmatpush1.bf16.msra.mxu0 0
    %685 = vmatprep.subr.bf16.mxu0 0
    %686 = vmatpush1.bf16.msra.mxu0 0
    %687 = vmatprep.subr.bf16.mxu0 0
    %688 = vmatpush1.bf16.msra.mxu0 0
    %689 = vmatprep.subr.bf16.mxu0 0
    %690 = vmatpush1.bf16.msra.mxu0 0
    %691 = vmatprep.subr.bf16.mxu0 0
    %692 = vmatpush1.bf16.msra.mxu0 0
    %693 = vmatprep.subr.bf16.mxu0 0
    %694 = vmatpush1.bf16.msra.mxu0 0
    %695 = vmatprep.subr.bf16.mxu0 0
    %696 = vmatpush1.bf16.msra.mxu0 0
    %697 = vmatprep.subr.bf16.mxu0 0
    %698 = vmatpush1.bf16.msra.mxu0 0
    %699 = vmatprep.mubr.bf16.mxu0 0
    %700 = vmatmul.mubr.bf16.gmra.mrb[0].mxu0 %v350
    %v701 = vpop.f32.mrb[0].mxu0
    %v702 = vadd.f32 0.0, %v701
    %v703 = vpop.f32.mrb[0].mxu0
    %v704 = vadd.f32 0.0, %v703
    %v705 = vpop.f32.mrb[0].mxu0
    %v706 = vadd.f32 0.0, %v705
    %v707 = vpop.f32.mrb[0].mxu0
    %v708 = vadd.f32 0.0, %v707
    %709 = vmatprep.mubr.bf16.mxu0 0
    %710 = vmatmul.mubr.bf16.gmra.mrb[0].mxu0 %v354
    %v711 = vpop.f32.mrb[0].mxu0
    %v712 = vadd.f32 0.0, %v711
    %v713 = vpop.f32.mrb[0].mxu0
    %v714 = vadd.f32 0.0, %v713
    %v715 = vpop.f32.mrb[0].mxu0
    %v716 = vadd.f32 0.0, %v715
    %v717 = vpop.f32.mrb[0].mxu0
    %v718 = vadd.f32 0.0, %v717
    %719 = vdwg.mxu0
    %720 = vmatprep.subr.bf16.mxu0 %v488
    %721 = vmatpush1.bf16.msra.mxu0 %v487
    %722 = vmatprep.subr.bf16.mxu0 %v492
    %723 = vmatpush1.bf16.msra.mxu0 %v491
    %724 = vmatprep.subr.bf16.mxu0 %v496
    %725 = vmatpush1.bf16.msra.mxu0 %v495
    %726 = vmatprep.subr.bf16.mxu0 %v500
    %727 = vmatpush1.bf16.msra.mxu0 %v499
    %728 = vmatprep.subr.bf16.mxu0 %v504
    %729 = vmatpush1.bf16.msra.mxu0 %v503
    %730 = vmatprep.subr.bf16.mxu0 %v508
    %731 = vmatpush1.bf16.msra.mxu0 %v507
    %732 = vmatprep.subr.bf16.mxu0 %v512
    %733 = vmatpush1.bf16.msra.mxu0 %v511
    %734 = vmatprep.subr.bf16.mxu0 %v516
    %735 = vmatpush1.bf16.msra.mxu0 %v515
    %736 = vmatprep.subr.bf16.mxu0 0
    %737 = vmatpush1.bf16.msra.mxu0 0
    %738 = vmatprep.subr.bf16.mxu0 0
    %739 = vmatpush1.bf16.msra.mxu0 0
    %740 = vmatprep.subr.bf16.mxu0 0
    %741 = vmatpush1.bf16.msra.mxu0 0
    %742 = vmatprep.subr.bf16.mxu0 0
    %743 = vmatpush1.bf16.msra.mxu0 0
    %744 = vmatprep.subr.bf16.mxu0 0
    %745 = vmatpush1.bf16.msra.mxu0 0
    %746 = vmatprep.subr.bf16.mxu0 0
    %747 = vmatpush1.bf16.msra.mxu0 0
    %748 = vmatprep.subr.bf16.mxu0 0
    %749 = vmatpush1.bf16.msra.mxu0 0
    %750 = vmatprep.subr.bf16.mxu0 0
    %751 = vmatpush1.bf16.msra.mxu0 0
    %752 = vmatprep.mubr.bf16.mxu0 0
    %753 = vmatmul.mubr.bf16.gmra.mrb[0].mxu0 %v350
    %v754 = vpop.f32.mrb[0].mxu0
    %v755 = vadd.f32 0.0, %v754
    %v756 = vpop.f32.mrb[0].mxu0
    %v757 = vadd.f32 0.0, %v756
    %v758 = vpop.f32.mrb[0].mxu0
    %v759 = vadd.f32 0.0, %v758
    %v760 = vpop.f32.mrb[0].mxu0
    %v761 = vadd.f32 0.0, %v760
    %762 = vmatprep.mubr.bf16.mxu0 0
    %763 = vmatmul.mubr.bf16.gmra.mrb[0].mxu0 %v354
    %v764 = vpop.f32.mrb[0].mxu0
    %v765 = vadd.f32 0.0, %v764
    %v766 = vpop.f32.mrb[0].mxu0
    %v767 = vadd.f32 0.0, %v766
    %v768 = vpop.f32.mrb[0].mxu0
    %v769 = vadd.f32 0.0, %v768
    %v770 = vpop.f32.mrb[0].mxu0
    %v771 = vadd.f32 0.0, %v770
    %772 = vdwg.mxu0
    %v773 = vmax.f32 %v663, %v702
    %v774 = vmax.f32 %v664, %v706
    %v775 = vmax.f32 %v665, %v712
    %v776 = vmax.f32 %v666, %v716
    %v777 = vmax.f32 %v773, %v704
    %v778 = vmax.f32 %v774, %v708
    %v779 = vmax.f32 %v775, %v714
    %v780 = vmax.f32 %v776, %v718
    %v781 = vmax.f32 %v777, %v755
    %v782 = vmax.f32 %v778, %v759
    %v783 = vmax.f32 %v779, %v765
    %v784 = vmax.f32 %v780, %v769
    %v785 = vmax.f32 %v781, %v757
    %v786 = vmax.f32 %v782, %v761
    %v787 = vmax.f32 %v783, %v767
    %v788 = vmax.f32 %v784, %v771
    %789 = vmatprep.subr.bf16.mxu0 %v486
    %790 = vmatpush1.bf16.msra.mxu0 %v485
    %791 = vmatprep.subr.bf16.mxu0 %v490
    %792 = vmatpush1.bf16.msra.mxu0 %v489
    %793 = vmatprep.subr.bf16.mxu0 %v494
    %794 = vmatpush1.bf16.msra.mxu0 %v493
    %795 = vmatprep.subr.bf16.mxu0 %v498
    %796 = vmatpush1.bf16.msra.mxu0 %v497
    %797 = vmatprep.subr.bf16.mxu0 %v502
    %798 = vmatpush1.bf16.msra.mxu0 %v501
    %799 = vmatprep.subr.bf16.mxu0 %v506
    %800 = vmatpush1.bf16.msra.mxu0 %v505
    %801 = vmatprep.subr.bf16.mxu0 %v510
    %802 = vmatpush1.bf16.msra.mxu0 %v509
    %803 = vmatprep.subr.bf16.mxu0 %v514
    %804 = vmatpush1.bf16.msra.mxu0 %v513
    %805 = vmatprep.subr.bf16.mxu0 0
    %806 = vmatpush1.bf16.msra.mxu0 0
    %807 = vmatprep.subr.bf16.mxu0 0
    %808 = vmatpush1.bf16.msra.mxu0 0
    %809 = vmatprep.subr.bf16.mxu0 0
    %810 = vmatpush1.bf16.msra.mxu0 0
    %811 = vmatprep.subr.bf16.mxu0 0
    %812 = vmatpush1.bf16.msra.mxu0 0
    %813 = vmatprep.subr.bf16.mxu0 0
    %814 = vmatpush1.bf16.msra.mxu0 0
    %815 = vmatprep.subr.bf16.mxu0 0
    %816 = vmatpush1.bf16.msra.mxu0 0
    %817 = vmatprep.subr.bf16.mxu0 0
    %818 = vmatpush1.bf16.msra.mxu0 0
    %819 = vmatprep.subr.bf16.mxu0 0
    %820 = vmatpush1.bf16.msra.mxu0 0
    %821 = vmatprep.mubr.bf16.mxu0 0
    %822 = vmatmul.mubr.bf16.gmra.mrb[0].mxu0 %v351
    %v823 = vpop.f32.mrb[0].mxu0
    %v824 = vadd.f32 0.0, %v823
    %v825 = vpop.f32.mrb[0].mxu0
    %v826 = vadd.f32 0.0, %v825
    %v827 = vpop.f32.mrb[0].mxu0
    %v828 = vadd.f32 0.0, %v827
    %v829 = vpop.f32.mrb[0].mxu0
    %v830 = vadd.f32 0.0, %v829
    %831 = vmatprep.mubr.bf16.mxu0 0
    %832 = vmatmul.mubr.bf16.gmra.mrb[0].mxu0 %v355
    %v833 = vpop.f32.mrb[0].mxu0
    %v834 = vadd.f32 0.0, %v833
    %v835 = vpop.f32.mrb[0].mxu0
    %v836 = vadd.f32 0.0, %v835
    %v837 = vpop.f32.mrb[0].mxu0
    %v838 = vadd.f32 0.0, %v837
    %v839 = vpop.f32.mrb[0].mxu0
    %v840 = vadd.f32 0.0, %v839
    %841 = vdwg.mxu0
    %842 = vmatprep.subr.bf16.mxu0 %v488
    %843 = vmatpush1.bf16.msra.mxu0 %v487
    %844 = vmatprep.subr.bf16.mxu0 %v492
    %845 = vmatpush1.bf16.msra.mxu0 %v491
    %846 = vmatprep.subr.bf16.mxu0 %v496
    %847 = vmatpush1.bf16.msra.mxu0 %v495
    %848 = vmatprep.subr.bf16.mxu0 %v500
    %849 = vmatpush1.bf16.msra.mxu0 %v499
    %850 = vmatprep.subr.bf16.mxu0 %v504
    %851 = vmatpush1.bf16.msra.mxu0 %v503
    %852 = vmatprep.subr.bf16.mxu0 %v508
    %853 = vmatpush1.bf16.msra.mxu0 %v507
    %854 = vmatprep.subr.bf16.mxu0 %v512
    %855 = vmatpush1.bf16.msra.mxu0 %v511
    %856 = vmatprep.subr.bf16.mxu0 %v516
    %857 = vmatpush1.bf16.msra.mxu0 %v515
    %858 = vmatprep.subr.bf16.mxu0 0
    %859 = vmatpush1.bf16.msra.mxu0 0
    %860 = vmatprep.subr.bf16.mxu0 0
    %861 = vmatpush1.bf16.msra.mxu0 0
    %862 = vmatprep.subr.bf16.mxu0 0
    %863 = vmatpush1.bf16.msra.mxu0 0
    %864 = vmatprep.subr.bf16.mxu0 0
    %865 = vmatpush1.bf16.msra.mxu0 0
    %866 = vmatprep.subr.bf16.mxu0 0
    %867 = vmatpush1.bf16.msra.mxu0 0
    %868 = vmatprep.subr.bf16.mxu0 0
    %869 = vmatpush1.bf16.msra.mxu0 0
    %870 = vmatprep.subr.bf16.mxu0 0
    %871 = vmatpush1.bf16.msra.mxu0 0
    %872 = vmatprep.subr.bf16.mxu0 0
    %873 = vmatpush1.bf16.msra.mxu0 0
    %874 = vmatprep.mubr.bf16.mxu0 0
    %875 = vmatmul.mubr.bf16.gmra.mrb[0].mxu0 %v351
    %v876 = vpop.f32.mrb[0].mxu0
    %v877 = vadd.f32 0.0, %v876
    %v878 = vpop.f32.mrb[0].mxu0
    %v879 = vadd.f32 0.0, %v878
    %v880 = vpop.f32.mrb[0].mxu0
    %v881 = vadd.f32 0.0, %v880
    %v882 = vpop.f32.mrb[0].mxu0
    %v883 = vadd.f32 0.0, %v882
    %884 = vmatprep.mubr.bf16.mxu0 0
    %885 = vmatmul.mubr.bf16.gmra.mrb[0].mxu0 %v355
    %v886 = vpop.f32.mrb[0].mxu0
    %v887 = vadd.f32 0.0, %v886
    %v888 = vpop.f32.mrb[0].mxu0
    %v889 = vadd.f32 0.0, %v888
    %v890 = vpop.f32.mrb[0].mxu0
    %v891 = vadd.f32 0.0, %v890
    %v892 = vpop.f32.mrb[0].mxu0
    %v893 = vadd.f32 0.0, %v892
    %894 = vdwg.mxu0
    %v895 = vmax.f32 %v785, %v824
    %v896 = vmax.f32 %v786, %v828
    %v897 = vmax.f32 %v787, %v834
    %v898 = vmax.f32 %v788, %v838
    %v899 = vmax.f32 %v895, %v826
    %v900 = vmax.f32 %v896, %v830
    %v901 = vmax.f32 %v897, %v836
    %v902 = vmax.f32 %v898, %v840
    %v903 = vmax.f32 %v899, %v877
    %v904 = vmax.f32 %v900, %v881
    %v905 = vmax.f32 %v901, %v887
    %v906 = vmax.f32 %v902, %v891
    %v907 = vmax.f32 %v903, %v879
    %v908 = vmax.f32 %v904, %v883
    %v909 = vmax.f32 %v905, %v889
    %v910 = vmax.f32 %v906, %v893
    %911 = vmatprep.subr.bf16.mxu0 %v486
    %912 = vmatpush1.bf16.msra.mxu0 %v485
    %913 = vmatprep.subr.bf16.mxu0 %v490
    %914 = vmatpush1.bf16.msra.mxu0 %v489
    %915 = vmatprep.subr.bf16.mxu0 %v494
    %916 = vmatpush1.bf16.msra.mxu0 %v493
    %917 = vmatprep.subr.bf16.mxu0 %v498
    %918 = vmatpush1.bf16.msra.mxu0 %v497
    %919 = vmatprep.subr.bf16.mxu0 %v502
    %920 = vmatpush1.bf16.msra.mxu0 %v501
    %921 = vmatprep.subr.bf16.mxu0 %v506
    %922 = vmatpush1.bf16.msra.mxu0 %v505
    %923 = vmatprep.subr.bf16.mxu0 %v510
    %924 = vmatpush1.bf16.msra.mxu0 %v509
    %925 = vmatprep.subr.bf16.mxu0 %v514
    %926 = vmatpush1.bf16.msra.mxu0 %v513
    %927 = vmatprep.subr.bf16.mxu0 0
    %928 = vmatpush1.bf16.msra.mxu0 0
    %929 = vmatprep.subr.bf16.mxu0 0
    %930 = vmatpush1.bf16.msra.mxu0 0
    %931 = vmatprep.subr.bf16.mxu0 0
    %932 = vmatpush1.bf16.msra.mxu0 0
    %933 = vmatprep.subr.bf16.mxu0 0
    %934 = vmatpush1.bf16.msra.mxu0 0
    %935 = vmatprep.subr.bf16.mxu0 0
    %936 = vmatpush1.bf16.msra.mxu0 0
    %937 = vmatprep.subr.bf16.mxu0 0
    %938 = vmatpush1.bf16.msra.mxu0 0
    %939 = vmatprep.subr.bf16.mxu0 0
    %940 = vmatpush1.bf16.msra.mxu0 0
    %941 = vmatprep.subr.bf16.mxu0 0
    %942 = vmatpush1.bf16.msra.mxu0 0
    %943 = vmatprep.mubr.bf16.mxu0 0
    %944 = vmatmul.mubr.bf16.gmra.mrb[0].mxu0 %v352
    %v945 = vpop.f32.mrb[0].mxu0
    %v946 = vadd.f32 0.0, %v945
    %v947 = vpop.f32.mrb[0].mxu0
    %v948 = vadd.f32 0.0, %v947
    %v949 = vpop.f32.mrb[0].mxu0
    %v950 = vadd.f32 0.0, %v949
    %v951 = vpop.f32.mrb[0].mxu0
    %v952 = vadd.f32 0.0, %v951
    %953 = vmatprep.mubr.bf16.mxu0 0
    %954 = vmatmul.mubr.bf16.gmra.mrb[0].mxu0 %v356
    %v955 = vpop.f32.mrb[0].mxu0
    %v956 = vadd.f32 0.0, %v955
    %v957 = vpop.f32.mrb[0].mxu0
    %v958 = vadd.f32 0.0, %v957
    %v959 = vpop.f32.mrb[0].mxu0
    %v960 = vadd.f32 0.0, %v959
    %v961 = vpop.f32.mrb[0].mxu0
    %v962 = vadd.f32 0.0, %v961
    %963 = vdwg.mxu0
    %964 = vmatprep.subr.bf16.mxu0 %v488
    %965 = vmatpush1.bf16.msra.mxu0 %v487
    %966 = vmatprep.subr.bf16.mxu0 %v492
    %967 = vmatpush1.bf16.msra.mxu0 %v491
    %968 = vmatprep.subr.bf16.mxu0 %v496
    %969 = vmatpush1.bf16.msra.mxu0 %v495
    %970 = vmatprep.subr.bf16.mxu0 %v500
    %971 = vmatpush1.bf16.msra.mxu0 %v499
    %972 = vmatprep.subr.bf16.mxu0 %v504
    %973 = vmatpush1.bf16.msra.mxu0 %v503
    %974 = vmatprep.subr.bf16.mxu0 %v508
    %975 = vmatpush1.bf16.msra.mxu0 %v507
    %976 = vmatprep.subr.bf16.mxu0 %v512
    %977 = vmatpush1.bf16.msra.mxu0 %v511
    %978 = vmatprep.subr.bf16.mxu0 %v516
    %979 = vmatpush1.bf16.msra.mxu0 %v515
    %980 = vmatprep.subr.bf16.mxu0 0
    %981 = vmatpush1.bf16.msra.mxu0 0
    %982 = vmatprep.subr.bf16.mxu0 0
    %983 = vmatpush1.bf16.msra.mxu0 0
    %984 = vmatprep.subr.bf16.mxu0 0
    %985 = vmatpush1.bf16.msra.mxu0 0
    %986 = vmatprep.subr.bf16.mxu0 0
    %987 = vmatpush1.bf16.msra.mxu0 0
    %988 = vmatprep.subr.bf16.mxu0 0
    %989 = vmatpush1.bf16.msra.mxu0 0
    %990 = vmatprep.subr.bf16.mxu0 0
    %991 = vmatpush1.bf16.msra.mxu0 0
    %992 = vmatprep.subr.bf16.mxu0 0
    %993 = vmatpush1.bf16.msra.mxu0 0
    %994 = vmatprep.subr.bf16.mxu0 0
    %995 = vmatpush1.bf16.msra.mxu0 0
    %996 = vmatprep.mubr.bf16.mxu0 0
    %997 = vmatmul.mubr.bf16.gmra.mrb[0].mxu0 %v352
    %v998 = vpop.f32.mrb[0].mxu0
    %v999 = vadd.f32 0.0, %v998
    %v1000 = vpop.f32.mrb[0].mxu0
    %v1001 = vadd.f32 0.0, %v1000
    %v1002 = vpop.f32.mrb[0].mxu0
    %v1003 = vadd.f32 0.0, %v1002
    %v1004 = vpop.f32.mrb[0].mxu0
    %v1005 = vadd.f32 0.0, %v1004
    %1006 = vmatprep.mubr.bf16.mxu0 0
    %1007 = vmatmul.mubr.bf16.gmra.mrb[0].mxu0 %v356
    %v1008 = vpop.f32.mrb[0].mxu0
    %v1009 = vadd.f32 0.0, %v1008
    %v1010 = vpop.f32.mrb[0].mxu0
    %v1011 = vadd.f32 0.0, %v1010
    %v1012 = vpop.f32.mrb[0].mxu0
    %v1013 = vadd.f32 0.0, %v1012
    %v1014 = vpop.f32.mrb[0].mxu0
    %v1015 = vadd.f32 0.0, %v1014
    %1016 = vdwg.mxu0
    %v1017 = vmax.f32 %v907, %v946
    %v1018 = vmax.f32 %v908, %v950
    %v1019 = vmax.f32 %v909, %v956
    %v1020 = vmax.f32 %v910, %v960
    %v1021 = vmax.f32 %v1017, %v948
    %v1022 = vmax.f32 %v1018, %v952
    %v1023 = vmax.f32 %v1019, %v958
    %v1024 = vmax.f32 %v1020, %v962
    %v1025 = vmax.f32 %v1021, %v999
    %v1026 = vmax.f32 %v1022, %v1003
    %v1027 = vmax.f32 %v1023, %v1009
    %v1028 = vmax.f32 %v1024, %v1013
    %v1029 = vmax.f32 %v1025, %v1001
    %v1030 = vmax.f32 %v1026, %v1005
    %v1031 = vmax.f32 %v1027, %v1011
    %v1032 = vmax.f32 %v1028, %v1015
    %v1033 = vld [vmem:[%s3] sm:$0x1]
    %v1035 = vlaneseq
    %v1036 = vshrl.u32 %v1035, 7
    %v1037 = vsub.s32 0, %v1036
    %v1038 = vrot.slane %v1033, %v1037
    %v1040 = vadd.f32 %v1029, %v1038
    %v1041 = vadd.f32 %v1030, %v1038
    %v1042 = vadd.f32 %v1031, %v1038
    %v1043 = vadd.f32 %v1032, %v1038
    %v1044 = vmax.f32 %v1040, 0.0
    %v1045 = vmax.f32 %v1041, 0.0
    %v1046 = vmax.f32 %v1042, 0.0
    %v1047 = vmax.f32 %v1043, 0.0
    %1048 = vst [vmem:[#allocation2] sm:$0xff] %v1044
    %1049 = vst [vmem:[#allocation2 + $0x8] sm:$0xff] %v1045
    %1050 = vst [vmem:[#allocation2 + $0x10] sm:$0xff] %v1046
    %1051 = vst [vmem:[#allocation2 + $0x18] sm:$0xff] %v1047
    // Predicated region
    $region18: #{sa_module_forward.1} parent=1 // pred_check
      _
    $region19: #{sa_module_forward.1} parent=1 // pred_check_branch
      %1053 = sbr.rel (0) target = $region21
    $region20: #{sa_module_forward.1} parent=1 // pred_region
      %s1055 = ssub.s32 512, 512
      %1056 = vsyncadd [#allocation3], %s1055
      %s1057 = sshll.u32 [#allocation2], 4
      %s1058 = int_to_ptr.vmem [resolvable:$true] %s1057
      %1063 = dma.vmem_to_hbm [thread:$0]  %s1058, 512, %s4, [#allocation3], 128, 128, 8
    $region21: #{sa_module_forward.1} parent=1 // pred_fallthru
      _
    // Predicated region
    $region22: #{sa_module_forward.1} parent=1 // pred_check
      _
    $region23: #{sa_module_forward.1} parent=1 // pred_check_branch
      %1065 = sbr.rel (0) target = $region25
    $region24: #{sa_module_forward.1} parent=1 // pred_region
      %1066 = dma.done [#allocation3], 512
    $region25: #{sa_module_forward.1} parent=1 // pred_fallthru
      _
    %1067 = vsyncpa [#allocation3], 1

</llo_original>
